<compile_context>
chip_gen: v6e
topology: v6e:2x2x1
jax: 0.10.0
libtpu: 0.0.40
codegen_flags: <defaults>
</compile_context>

<pallas_src>
import functools
import numpy as np
import jax
import jax.numpy as jnp
from jax.experimental import pallas as pl
from jax.experimental.pallas import tpu as pltpu


# ----------------------------------------------------------------------------
# Roll-convention guard (conv taps must not depend on an assumed rotate direction)
# ----------------------------------------------------------------------------

_ROLL_NEG = True  # True -> pltpu.roll follows jnp.roll (out[i] = in[(i - shift) % N]).


def _check_roll_convention():
    """Tiny compiled probe pinning down pltpu.roll's rotation direction."""
    global _ROLL_NEG
    x = jnp.arange(8 * 128, dtype=jnp.float32).reshape(8, 128)

    def _probe(x_ref, o_ref):
        o_ref[...] = pltpu.roll(x_ref[...], shift=3, axis=1)

    y = pl.pallas_call(_probe, out_shape=jax.ShapeDtypeStruct((8, 128), jnp.float32))(x)
    _ROLL_NEG = bool(jnp.array_equal(y, jnp.roll(x, 3, axis=1)))


def _roll_amount(spatial_shift, npad):
    """pltpu.roll amount that realizes out[:, p] = in[:, p + spatial_shift]."""
    return (-spatial_shift) % npad if _ROLL_NEG else spatial_shift % npad


def _padded_bytes(shape, dtype):
    """VMEM footprint of a block after (sublane, lane) tile padding."""
    item = np.dtype(dtype).itemsize
    sub = 8 * max(1, 4 // item)
    dims = list(shape) if len(shape) >= 2 else [1] + list(shape)
    lane = -(-dims[-1] // 128) * 128
    subl = -(-dims[-2] // sub) * sub
    lead = 1
    for d in dims[:-2]:
        lead *= int(d)
    return int(lead * subl * lane * item)


# ----------------------------------------------------------------------------
# In-kernel LSTM gate math (shared by encoder / forecaster kernels)
# ----------------------------------------------------------------------------

def _lstm_gates(y, b_ref, peep_ref, c_prev, mask, *, ch, npad, shifts):
    """Reduce the per-tap gate stack with lane rolls, then apply the LSTM cell math.

    y    : (KK*4*ch, npad) f32 — per-tap fused (i|f|c|o) pre-activations computed from
           *unshifted* x/h; the conv tap shift is applied here to the matmul output
           (roll commutes with the matmul along the untouched lane axis).
    """
    z = jnp.zeros((4 * ch, npad), jnp.float32)
    for k, shift in enumerate(shifts):
        slab = y[k * 4 * ch:(k + 1) * 4 * ch, :]
        if shift:
            slab = pltpu.roll(slab, shift=shift, axis=1)
        z = z + slab
    z = z + b_ref[...]                                # fused (bi|bf|bc|bo), added once

    zi = z[0 * ch:1 * ch]
    zf = z[1 * ch:2 * ch]
    zc = z[2 * ch:3 * ch]
    zo = z[3 * ch:4 * ch]

    i_g = jax.nn.sigmoid(zi + c_prev * peep_ref[0])   # wci
    f_g = jax.nn.sigmoid(zf + c_prev * peep_ref[1])   # wcf
    c_new = f_g * c_prev + i_g * jnp.tanh(zc)
    o_g = jax.nn.sigmoid(zo + c_new * peep_ref[2])    # wco
    h_new = o_g * jnp.tanh(c_new)
    # Keep the conv halo / lane padding at exactly zero across timesteps.
    return h_new * mask, c_new * mask


# ----------------------------------------------------------------------------
# Fused multi-layer dConvLSTM kernels
# ----------------------------------------------------------------------------

def _encoder_kernel(*refs, num_layers, chs, npad, shifts):
    """All encoder layers fused; grid = (batch, time); emits only last-step (h, c)."""
    idx = 0
    x_ref = refs[idx]; idx += 1
    wx, wh, bias, peep = [], [], [], []
    for _ in range(num_layers):
        wx.append(refs[idx]); wh.append(refs[idx + 1])
        bias.append(refs[idx + 2]); peep.append(refs[idx + 3])
        idx += 4
    mask_ref = refs[idx]; idx += 1
    h_out = [refs[idx + 2 * l] for l in range(num_layers)]
    c_out = [refs[idx + 2 * l + 1] for l in range(num_layers)]
    idx += 2 * num_layers
    h_scr = [refs[idx + 2 * l] for l in range(num_layers)]
    c_scr = [refs[idx + 2 * l + 1] for l in range(num_layers)]

    t = pl.program_id(1)

    @pl.when(t == 0)
    def _init():
        for l in range(num_layers):
            h_scr[l][...] = jnp.zeros_like(h_scr[l])
            c_scr[l][...] = jnp.zeros_like(c_scr[l])

    m = mask_ref[...]                 # (1, npad) interior-pixel mask
    x_in = x_ref[0, 0]                # (C_in, npad) bf16 — only per-step DMA
    for l in range(num_layers):
        h_prev = h_scr[l][...]
        c_prev = c_scr[l][...]
        y = jnp.dot(wx[l][...], x_in, preferred_element_type=jnp.float32)
        y = y + jnp.dot(wh[l][...], h_prev.astype(jnp.bfloat16),
                        preferred_element_type=jnp.float32)
        h_new, c_new = _lstm_gates(y, bias[l], peep[l], c_prev, m,
                                   ch=chs[l], npad=npad, shifts=shifts)
        h_scr[l][...] = h_new
        c_scr[l][...] = c_new
        x_in = h_new.astype(jnp.bfloat16)      # next layer consumes h_t straight from VMEM

    @pl.when(t == pl.num_programs(1) - 1)
    def _emit():
        for l in range(num_layers):
            h_out[l][0] = h_scr[l][...]
            c_out[l][0] = c_scr[l][...]


def _forecaster_kernel(*refs, num_layers, chs, cin, npad, shifts):
    """All forecaster layers + fused final 1x1 conv/sigmoid; grid = (batch, out_seq_len).

    t == 0 emits the prediction from the encoder's last hidden states (h0); each t >= 1
    runs one recurrent step (layer 0 has a zero input sequence, so its x path is skipped
    entirely) and emits the prediction for that step.
    """
    idx = 0
    h0 = [refs[idx + 2 * l] for l in range(num_layers)]
    c0 = [refs[idx + 2 * l + 1] for l in range(num_layers)]
    idx += 2 * num_layers
    wx, wh, bias, peep = [], [], [], []
    for l in range(num_layers):
        if l > 0:
            wx.append(refs[idx]); idx += 1
        else:
            wx.append(None)                    # zero input sequence -> no x path
        wh.append(refs[idx]); bias.append(refs[idx + 1]); peep.append(refs[idx + 2])
        idx += 3
    wf = [refs[idx + l] for l in range(num_layers)]; idx += num_layers
    fb_ref = refs[idx]; idx += 1
    mask_ref = refs[idx]; idx += 1
    pred_ref = refs[idx]; idx += 1
    h_scr = [refs[idx + 2 * l] for l in range(num_layers)]
    c_scr = [refs[idx + 2 * l + 1] for l in range(num_layers)]

    t = pl.program_id(1)
    m = mask_ref[...]

    @pl.when(t == 0)
    def _init():
        for l in range(num_layers):
            h_scr[l][...] = h0[l][0]
            c_scr[l][...] = c0[l][0]

    @pl.when(t > 0)
    def _step():
        x_in = None
        for l in range(num_layers):
            h_prev = h_scr[l][...]
            c_prev = c_scr[l][...]
            y = jnp.dot(wh[l][...], h_prev.astype(jnp.bfloat16),
                        preferred_element_type=jnp.float32)
            if l > 0:
                y = y + jnp.dot(wx[l][...], x_in, preferred_element_type=jnp.float32)
            h_new, c_new = _lstm_gates(y, bias[l], peep[l], c_prev, m,
                                       ch=chs[l], npad=npad, shifts=shifts)
            h_scr[l][...] = h_new
            c_scr[l][...] = c_new
            x_in = h_new.astype(jnp.bfloat16)

    # Fused final 1x1 conv + sigmoid over the channel-concat of all layers' current h.
    acc = jnp.zeros((cin, npad), jnp.float32)
    for l in range(num_layers):
        acc = acc + jnp.dot(wf[l][...], h_scr[l][...].astype(jnp.bfloat16),
                            preferred_element_type=jnp.float32)
    pred_ref[0, 0] = jax.nn.sigmoid(acc + fb_ref[...])


# ----------------------------------------------------------------------------
# pallas_call wrappers
# ----------------------------------------------------------------------------

def _run_encoder(layers, x_seq, mask, *, chs, shifts, npad):
    B, T, cin, _ = x_seq.shape
    L = len(layers)

    vmem = [0]
    def _spec(shape, dtype, index_map):
        vmem[0] += 2 * _padded_bytes(shape, dtype)
        return pl.BlockSpec(tuple(shape), index_map)

    in_specs = [_spec((1, 1, cin, npad), x_seq.dtype, lambda b, t: (b, t, 0, 0))]
    args = [x_seq]
    for lp in layers:
        for name in ('wx', 'wh', 'bias', 'peep'):
            a = lp[name]
            imap = (lambda b, t: (0, 0, 0)) if a.ndim == 3 else (lambda b, t: (0, 0))
            in_specs.append(_spec(a.shape, a.dtype, imap))
            args.append(a)
    in_specs.append(_spec(mask.shape, mask.dtype, lambda b, t: (0, 0)))
    args.append(mask)

    out_shapes, out_specs = [], []
    for ch in chs:
        for _ in range(2):                              # h_last, c_last per layer
            out_shapes.append(jax.ShapeDtypeStruct((B, ch, npad), jnp.float32))
            out_specs.append(_spec((1, ch, npad), jnp.float32, lambda b, t: (b, 0, 0)))
    scratch = []
    for ch in chs:
        for _ in range(2):                              # h, c state per layer
            scratch.append(pltpu.VMEM((ch, npad), jnp.float32))
            vmem[0] += _padded_bytes((ch, npad), jnp.float32)

    kernel = functools.partial(_encoder_kernel, num_layers=L, chs=tuple(chs),
                               npad=npad, shifts=tuple(shifts))
    limit = int(min(32 * 1024 * 1024, vmem[0] + 8 * 1024 * 1024))   # ~10 MiB here
    outs = pl.pallas_call(
        kernel,
        out_shape=tuple(out_shapes),
        grid_spec=pltpu.PrefetchScalarGridSpec(
            num_scalar_prefetch=0,
            grid=(B, T),
            in_specs=in_specs,
            out_specs=tuple(out_specs),
            scratch_shapes=scratch),
        compiler_params=pltpu.CompilerParams(
            dimension_semantics=("parallel", "arbitrary"),
            vmem_limit_bytes=limit),
    )(*args)
    h_last = [outs[2 * l] for l in range(L)]
    c_last = [outs[2 * l + 1] for l in range(L)]
    return h_last, c_last


def _run_forecaster(layers, wf_list, fb, h0_list, c0_list, mask, out_seq_len,
                    *, chs, cin, shifts, npad):
    L = len(layers)
    B = h0_list[0].shape[0]
    T = out_seq_len

    vmem = [0]
    def _spec(shape, dtype, index_map):
        vmem[0] += 2 * _padded_bytes(shape, dtype)
        return pl.BlockSpec(tuple(shape), index_map)

    in_specs, args = [], []
    for l in range(L):
        in_specs.append(_spec((1, chs[l], npad), jnp.float32, lambda b, t: (b, 0, 0)))
        args.append(h0_list[l])
        in_specs.append(_spec((1, chs[l], npad), jnp.float32, lambda b, t: (b, 0, 0)))
        args.append(c0_list[l])
    for l, lp in enumerate(layers):
        names = ('wh', 'bias', 'peep') if l == 0 else ('wx', 'wh', 'bias', 'peep')
        for name in names:
            a = lp[name]
            imap = (lambda b, t: (0, 0, 0)) if a.ndim == 3 else (lambda b, t: (0, 0))
            in_specs.append(_spec(a.shape, a.dtype, imap))
            args.append(a)
    for l in range(L):
        a = wf_list[l]
        in_specs.append(_spec(a.shape, a.dtype, lambda b, t: (0, 0)))
        args.append(a)
    in_specs.append(_spec(fb.shape, fb.dtype, lambda b, t: (0, 0)))
    args.append(fb)
    in_specs.append(_spec(mask.shape, mask.dtype, lambda b, t: (0, 0)))
    args.append(mask)

    out_shape = jax.ShapeDtypeStruct((B, T, cin, npad), jnp.float32)
    out_spec = _spec((1, 1, cin, npad), jnp.float32, lambda b, t: (b, t, 0, 0))
    scratch = []
    for ch in chs:
        for _ in range(2):
            scratch.append(pltpu.VMEM((ch, npad), jnp.float32))
            vmem[0] += _padded_bytes((ch, npad), jnp.float32)

    kernel = functools.partial(_forecaster_kernel, num_layers=L, chs=tuple(chs),
                               cin=cin, npad=npad, shifts=tuple(shifts))
    limit = int(min(32 * 1024 * 1024, vmem[0] + 8 * 1024 * 1024))
    return pl.pallas_call(
        kernel,
        out_shape=out_shape,
        grid_spec=pltpu.PrefetchScalarGridSpec(
            num_scalar_prefetch=0,
            grid=(B, T),
            in_specs=in_specs,
            out_specs=out_spec,
            scratch_shapes=scratch),
        compiler_params=pltpu.CompilerParams(
            dimension_semantics=("parallel", "arbitrary"),
            vmem_limit_bytes=limit),
    )(*args)


# ----------------------------------------------------------------------------
# Parameter init (mirrors the PyTorch __init__ distributions; deterministic)
# ----------------------------------------------------------------------------

def init_cell(key, cin, cout, kh, kw):
    kx, kh2 = jax.random.split(key)
    bx = 1.0 / float(np.sqrt(cin))
    bh = 1.0 / float(np.sqrt(cout))
    # Per-gate conv weights, gate order (i, f, c, o), laid out (kh, kw, 4*cout, cin_path).
    # x path = conv{1,3,5,7} (bound 1/sqrt(cin)); h path = conv{2,4,6,8} (bound 1/sqrt(cout)).
    wx_raw = jax.random.uniform(kx, (kh, kw, 4 * cout, cin), jnp.float32, -bx, bx)
    wh_raw = jax.random.uniform(kh2, (kh, kw, 4 * cout, cout), jnp.float32, -bh, bh)
    return dict(
        # MXU form: rows stacked over (tap, gate, out-channel), K = input channels.
        wx=wx_raw.reshape(kh * kw * 4 * cout, cin).astype(jnp.bfloat16),
        wh=wh_raw.reshape(kh * kw * 4 * cout, cout).astype(jnp.bfloat16),
        bias=jnp.zeros((4 * cout, 1), jnp.float32),        # (bi|bf|bc|bo), zero init
        peep=jnp.zeros((3, cout, 1), jnp.float32),         # (wci, wcf, wco), zero init
        wx_raw=wx_raw, wh_raw=wh_raw)                      # f32 copies for the reference


def init_model(key, in_channels, hidden_channels, kernel_size):
    kh, kw = kernel_size
    k_enc, k_fore, k_fc = jax.random.split(key, 3)

    def init_net(k):
        in_chs = [in_channels] + list(hidden_channels)
        ks = jax.random.split(k, len(hidden_channels))
        return [init_cell(ks[i], in_chs[i], hidden_channels[i], kh, kw)
                for i in range(len(hidden_channels))]

    sum_c = int(sum(hidden_channels))
    bound = 1.0 / float(np.sqrt(sum_c))
    final_w_raw = jax.random.uniform(k_fc, (in_channels, sum_c), jnp.float32, -bound, bound)
    offs = np.cumsum([0] + list(hidden_channels))
    final_w = [final_w_raw[:, int(offs[i]):int(offs[i + 1])].astype(jnp.bfloat16)
               for i in range(len(hidden_channels))]
    final_b = jnp.zeros((in_channels, 1), jnp.float32)
    return dict(encoder=init_net(k_enc), forecaster=init_net(k_fore),
                final_w=final_w, final_w_raw=final_w_raw, final_b=final_b)


# ----------------------------------------------------------------------------
# Model forward
# ----------------------------------------------------------------------------

def model_forward(params, x, out_seq_len, kernel_size):
    """EncoderForecasterModel forward.  x: (B, T, C, H, W) -> (B, out_seq_len, C, H, W)."""
    kh, kw = kernel_size
    ph, pw = kh // 2, kw // 2
    x = x.astype(jnp.float32)
    B, T, C, H, W = x.shape
    Hp, Wp = H + 2 * ph, W + 2 * pw
    n_pix = Hp * Wp
    npad = -(-n_pix // 128) * 128                           # lane-dense pixel axis
    chs = tuple(int(lp['bias'].shape[0]) // 4 for lp in params['encoder'])
    taps = tuple((dy - ph) * Wp + (dx - pw) for dy in range(kh) for dx in range(kw))
    shifts = tuple(_roll_amount(s, npad) for s in taps)

    # (B,T,C,H,W) -> zero-padded, flattened grid with pixels on the lane axis, bf16 for MXU.
    xp = jnp.pad(x, ((0, 0), (0, 0), (0, 0), (ph, ph), (pw, pw))).reshape(B, T, C, n_pix)
    xp = jnp.pad(xp, ((0, 0), (0, 0), (0, 0), (0, npad - n_pix))).astype(jnp.bfloat16)

    mask2d = jnp.zeros((Hp, Wp), jnp.float32).at[ph:ph + H, pw:pw + W].set(1.0)
    mask = jnp.zeros((1, npad), jnp.float32).at[0, :n_pix].set(mask2d.reshape(-1))

    h_last, c_last = _run_encoder(params['encoder'], xp, mask,
                                  chs=chs, shifts=shifts, npad=npad)
    preds = _run_forecaster(params['forecaster'], params['final_w'], params['final_b'],
                            h_last, c_last, mask, out_seq_len,
                            chs=chs, cin=C, shifts=shifts, npad=npad)
    preds = preds[:, :, :, :n_pix].reshape(B, out_seq_len, C, Hp, Wp)
    return preds[:, :, :, ph:ph + H, pw:pw + W]


# ----------------------------------------------------------------------------
# Pure-JAX reference (mirrors the PyTorch module; operands rounded to bf16 at the
# same points as the kernels so the comparison tolerance can stay tight)
# ----------------------------------------------------------------------------

def reference_forward(params, x, out_seq_len, kernel_size):
    kh, kw = kernel_size
    ph, pw = kh // 2, kw // 2
    x = x.astype(jnp.float32)
    B, T, C, H, W = x.shape
    bf = lambda v: v.astype(jnp.bfloat16).astype(jnp.float32)
    hp = jax.lax.Precision.HIGHEST

    def conv4(inp, w_raw):             # inp: (B, Cp, H, W);  w_raw: (kh, kw, 4*ch, Cp)
        xp = jnp.pad(inp, ((0, 0), (0, 0), (ph, ph), (pw, pw)))
        out = jnp.zeros((inp.shape[0], w_raw.shape[2], H, W), jnp.float32)
        for dy in range(kh):
            for dx in range(kw):
                out = out + jnp.einsum('oc,bchw->bohw', bf(w_raw[dy, dx]),
                                       bf(xp[:, :, dy:dy + H, dx:dx + W]), precision=hp)
        return out

    def cell_step(lp, x_t, h, c):
        ch = lp['bias'].shape[0] // 4
        z = conv4(x_t, lp['wx_raw']) + conv4(h, lp['wh_raw']) \
            + lp['bias'].reshape(1, 4 * ch, 1, 1)
        zi, zf, zc, zo = (z[:, g * ch:(g + 1) * ch] for g in range(4))
        wci, wcf, wco = (lp['peep'][g].reshape(1, ch, 1, 1) for g in range(3))
        i_g = jax.nn.sigmoid(zi + c * wci)
        f_g = jax.nn.sigmoid(zf + c * wcf)
        c_new = f_g * c + i_g * jnp.tanh(zc)
        o_g = jax.nn.sigmoid(zo + c_new * wco)
        return o_g * jnp.tanh(c_new), c_new

    def net(layers, x_seq, init_hidden):
        cur = x_seq
        outs, hidden = [], []
        for li, lp in enumerate(layers):
            ch = lp['bias'].shape[0] // 4
            if init_hidden is None:
                h = jnp.zeros((B, ch, H, W), jnp.float32)
                c = jnp.zeros((B, ch, H, W), jnp.float32)
            else:
                h, c = init_hidden[li]
            hs = []
            for t in range(cur.shape[1]):
                h, c = cell_step(lp, cur[:, t], h, c)
                hs.append(h)
            cur = jnp.stack(hs, axis=1)
            outs.append(cur)
            hidden.append((h, c))
        return outs, hidden

    enc_outs, enc_hidden = net(params['encoder'], x, None)
    fore_x = jnp.zeros((B, out_seq_len - 1, C, H, W), jnp.float32)
    fore_outs, _ = net(params['forecaster'], fore_x, enc_hidden)
    stack = jnp.concatenate(
        [jnp.concatenate([o[:, -1:] for o in enc_outs], axis=2),
         jnp.concatenate(fore_outs, axis=2)], axis=1)          # (B, T_out, sumC, H, W)
    z = jnp.einsum('os,btshw->btohw', bf(params['final_w_raw']), bf(stack), precision=hp)
    return jax.nn.sigmoid(z + params['final_b'].reshape(1, 1, C, 1, 1))


# ----------------------------------------------------------------------------
# Main
# ----------------------------------------------------------------------------

if __name__ == "__main__":
    _check_roll_convention()

    key = jax.random.PRNGKey(0)
    B, T_in, C, H, W = 2, 4, 4, 16, 16
    out_seq_len = 3
    hidden_channels = [8, 8]
    kernel_size = (3, 3)

    k_params, k_data = jax.random.split(key)
    params = init_model(k_params, C, hidden_channels, kernel_size)
    x = jax.random.uniform(k_data, (B, T_in, C, H, W), jnp.float32)

    fwd = jax.jit(model_forward, static_argnums=(2, 3))
    out = jax.block_until_ready(fwd(params, x, out_seq_len, kernel_size))

    assert out.shape == (B, out_seq_len, C, H, W), out.shape
    assert bool(jnp.all(jnp.isfinite(out)))

    ref = jax.jit(reference_forward, static_argnums=(2, 3))(params, x, out_seq_len, kernel_size)
    max_err = float(jnp.max(jnp.abs(out - ref)))
    assert max_err < 5e-3, f"kernel vs reference max abs error {max_err}"

    print("KERNEL_OK")
</pallas_src>

<mosaic_0001>
module attributes {stable_mosaic.version = 11 : i64} {
  func.func @_probe(%arg0: memref<8x128xf32, #tpu.memory_space<vmem>>, %arg1: memref<8x128xf32, #tpu.memory_space<vmem>>) attributes {dimension_semantics = [], scalar_prefetch = 0 : i64, scratch_operands = 0 : i64, tpu.core_type = #tpu.core_type<tc>} {
    %c0 = arith.constant 0 : index
    %c0_0 = arith.constant 0 : index
    %0 = vector.load %arg0[%c0, %c0_0] : memref<8x128xf32, #tpu.memory_space<vmem>>, vector<8x128xf32>
    %c3_i32 = arith.constant 3 : i32
    %1 = tpu.dynamic_rotate %0 by %c3_i32 dim 1 : vector<8x128xf32>, i32 -> vector<8x128xf32>
    %c0_1 = arith.constant 0 : index
    %c0_2 = arith.constant 0 : index
    %2 = vector.load %arg1[%c0_1, %c0_2] : memref<8x128xf32, #tpu.memory_space<vmem>>, vector<8x128xf32>
    tpu.vector_store %arg1[%c0_1, %c0_2], %1 {strides = array<i32>} : memref<8x128xf32, #tpu.memory_space<vmem>>, vector<8x128xf32>,
    return
  }
}

</mosaic_0001>

<llo_original>
// kernel: tpu_custom_call.1
$region0: #{tpu_custom_call.1}
  #allocation0 [shape = 'u32[]', space=smem, size = 0x4, offset = 0x4, fixed_abs, tag = 'smem constant byte address 0x4 - core index']
  #allocation1 [shape = 'u32[144,128]{1,0:T(1,128)}', space=vmem, size = 0x12000, scoped, tag = 'internal scratch']
  %s0 = inlined_call_operand.hbm [shape: f32[8,128], index: 0, kind: input, shape index: {}]
  %s1 = inlined_call_operand.hbm [shape: f32[8,128], index: 1, kind: output, shape index: {}]
  %s2 = sld [smem:[#allocation0]]
  $region18: #{tpu_custom_call.1} parent=0
    _
  %s4 = ssub.s32 1, %s2
  %s5 = scalar_select 0, %s4, %s2
  $region1: #{tpu_custom_call.1} parent=0
    #allocation2 [shape = 'u8[4096]{0}', space=vmem, size = 0x1000, scoped, tag = 'input window, operand 0, single buffered']
    #allocation3 [shape = 's32[1]{0}', space=sflag, size = 0x4, scoped, tag = 'scoped memory for tpu_custom_call.1']
    #allocation4 [shape = 's32[1]{0}', space=sflag, size = 0x4, scoped, tag = 'scoped memory for tpu_custom_call.1']
    #allocation5 [shape = 'u8[4096]{0}', space=vmem, size = 0x1000, scoped, tag = 'output window, operand 0, single buffered']
    %6 = vsyncpa [#allocation3], 0
    %7 = vsyncpa [#allocation4], 0
    // Predicated region
    $region2: #{tpu_custom_call.1} parent=1 // pred_check
      _
    $region3: #{tpu_custom_call.1} parent=1 // pred_check_branch
      %9 = sbr.rel (0) target = $region5
    $region4: #{tpu_custom_call.1} parent=1 // pred_region
      %s11 = ssub.s32 128, 128
      %12 = vsyncadd [#allocation3], %s11
      %s14 = sshll.u32 [#allocation2], 4
      %s15 = int_to_ptr.vmem [resolvable:$true] %s14
      %17 = dma.hbm_to_vmem [thread:$0]  %s0, 128, %s15, [#allocation3]
    $region5: #{tpu_custom_call.1} parent=1 // pred_fallthru
      _
    // Predicated region
    $region6: #{tpu_custom_call.1} parent=1 // pred_check
      _
    $region7: #{tpu_custom_call.1} parent=1 // pred_check_branch
      %19 = sbr.rel (0) target = $region9
    $region8: #{tpu_custom_call.1} parent=1 // pred_region
      %20 = dma.done [#allocation3], 128
    $region9: #{tpu_custom_call.1} parent=1 // pred_fallthru
      _
    %v21 = vld [vmem:[#allocation2] sm:$0xff]
    %22 = vrot.lane.b32.xlu0 %v21, 3
    %v23 = vpop.permute.xlu0 %22
    %24 = vst [vmem:[#allocation5] sm:$0xff] %v23
    // Predicated region
    $region10: #{tpu_custom_call.1} parent=1 // pred_check
      _
    $region11: #{tpu_custom_call.1} parent=1 // pred_check_branch
      %26 = sbr.rel (0) target = $region13
    $region12: #{tpu_custom_call.1} parent=1 // pred_region
      %s28 = ssub.s32 128, 128
      %29 = vsyncadd [#allocation4], %s28
      %s31 = sshll.u32 [#allocation5], 4
      %s32 = int_to_ptr.vmem [resolvable:$true] %s31
      %34 = dma.vmem_to_hbm [thread:$0]  %s32, 128, %s1, [#allocation4]
    $region13: #{tpu_custom_call.1} parent=1 // pred_fallthru
      _
    // Predicated region
    $region14: #{tpu_custom_call.1} parent=1 // pred_check
      _
    $region15: #{tpu_custom_call.1} parent=1 // pred_check_branch
      %36 = sbr.rel (0) target = $region17
    $region16: #{tpu_custom_call.1} parent=1 // pred_region
      %37 = dma.done [#allocation4], 128
    $region17: #{tpu_custom_call.1} parent=1 // pred_fallthru
      _
    %38 = vsyncpa [#allocation3], 1
    %39 = vsyncpa [#allocation4], 1

</llo_original>
